<compile_context>
chip_gen: v7x
topology: tpu7x:2x2x1
jax: 0.10.0
libtpu: 0.0.40
codegen_flags: <defaults>
</compile_context>

<pallas_src>
import functools

import jax
import jax.numpy as jnp
from jax.experimental import pallas as pl
from jax.experimental.pallas import tpu as pltpu

PAD_TOKEN = 0
EOT_TOKEN = 1

# Tables at or below this size take the VMEM-resident fast path.
_RESIDENT_TABLE_BYTES = 4 * 1024 * 1024
# Budget for the (double-buffered) per-step output tile; keeps us under the
# default scoped-VMEM limit on all generations (v5e 16 MiB, v6e/v7x 32 MiB).
_TILE_VMEM_BUDGET = 8 * 1024 * 1024


def _round_up(x: int, m: int) -> int:
    return ((x + m - 1) // m) * m


# ----------------------------- kernels ----------------------------------------

def _embed_mask_resident_kernel(ids_smem, ids_lane_ref, table_ref, emb_ref,
                                mask_ref, *, pad_token: int, eot_token: int):
    """Small-table path: table is resident in VMEM; gather via dynamic loads.

    ids_smem:     (N,)          int32  all token ids (scalar-prefetched, SMEM)
    ids_lane_ref: (1, 1, tile)  int32  lane-dense id tile (VMEM), for the mask
    table_ref:    (V, D)               embedding table, resident in VMEM
    emb_ref:      (tile, D)            gathered embeddings (output tile)
    mask_ref:     (1, 1, tile)  int32  (id != pad) & (id != eot)
    """
    i = pl.program_id(0)
    tile = emb_ref.shape[0]
    vocab = table_ref.shape[0]
    base = pl.multiple_of(i * tile, tile)

    # Fully unrolled (static Python loop) per-row dynamic VMEM gather.
    for j in range(tile):
        row = jnp.clip(ids_smem[base + j], 0, vocab - 1)
        emb_ref[pl.ds(j, 1), :] = table_ref[pl.ds(row, 1), :]

    ids = ids_lane_ref[...]
    mask_ref[...] = ((ids != pad_token) & (ids != eot_token)).astype(mask_ref.dtype)


def _embed_mask_gather_kernel(ids_smem, ids_lane_ref, table_hbm, emb_ref,
                              mask_ref, copy_sem, *, pad_token: int,
                              eot_token: int):
    """Big-table path: per-row HBM->VMEM DMAs straight into the output tile.

    ids_smem:     (N,)          int32  all token ids (scalar-prefetched, SMEM)
    ids_lane_ref: (1, 1, tile)  int32  lane-dense id tile (VMEM), for the mask
    table_hbm:    (V, D)               embedding table, left in HBM (pl.ANY)
    emb_ref:      (tile, D)            gathered embeddings (output tile, VMEM)
    mask_ref:     (1, 1, tile)  int32  (id != pad) & (id != eot)
    copy_sem:     ()                   single shared DMA semaphore
    """
    i = pl.program_id(0)
    tile = emb_ref.shape[0]
    vocab = table_hbm.shape[0]
    base = pl.multiple_of(i * tile, tile)

    # Issue one HBM->VMEM DMA per token row, directly into the output tile.
    # Static Python loop == fully unrolled, so descriptor issue stays near the
    # vector-misc slot rate; all copies signal the same semaphore.
    for j in range(tile):
        row = jnp.clip(ids_smem[base + j], 0, vocab - 1)
        pltpu.make_async_copy(table_hbm.at[row], emb_ref.at[j], copy_sem).start()

    # Validity mask on the VPU while the gather DMAs are in flight.
    ids = ids_lane_ref[...]
    mask_ref[...] = ((ids != pad_token) & (ids != eot_token)).astype(mask_ref.dtype)

    # Single collapsed wait: byte counts accumulate on copy_sem, and this
    # descriptor's (tile, D) shape covers exactly tile * D * itemsize bytes ==
    # the sum of the `tile` row copies above.  (tile <= V is guaranteed by the
    # wrapper on this path, so the source slice is in bounds.)
    pltpu.make_async_copy(table_hbm.at[pl.ds(0, tile)], emb_ref, copy_sem).wait()


# ----------------------------- wrapper -----------------------------------------

def embedder_forward(token_ids: jnp.ndarray, table: jnp.ndarray, *,
                     tile: int = 256, pad_token: int = PAD_TOKEN,
                     eot_token: int = EOT_TOKEN,
                     vmem_table_bytes: int = _RESIDENT_TABLE_BYTES):
    """token_ids: int [B, S]; table: [V, D] -> (emb [B,S,D] (table.dtype), mask bool [B,S]).

    D should be a multiple of 128 for lane-dense stores (still correct if not).
    Pass a bf16 table to halve HBM traffic on the gather path.
    """
    B, S = token_ids.shape
    V, D = table.shape
    itemsize = jnp.dtype(table.dtype).itemsize
    N = B * S

    table_bytes = V * D * itemsize
    resident = table_bytes <= vmem_table_bytes

    # Tile selection: as large as the VMEM budget allows (amortizes the
    # ~0.35 us per-grid-step overhead), capped to the padded token count, kept
    # a multiple of 8.  On the gather path also keep tile <= V so the
    # collapsed-wait source slice is in bounds (always true given the budgets,
    # but enforced explicitly).
    tile = min(tile, max(8, _TILE_VMEM_BUDGET // (2 * D * itemsize)))
    tile = min(tile, _round_up(N, 8))
    if not resident:
        tile = min(tile, max(8, (V // 8) * 8))
    tile = max(8, (tile // 8) * 8)

    n_pad = _round_up(N, tile)
    n_tiles = n_pad // tile  # NOTE: an even n_tiles load-balances v7x's 2 TCs.

    ids_flat = token_ids.reshape(-1).astype(jnp.int32)
    if n_pad != N:
        ids_flat = jnp.concatenate(
            [ids_flat, jnp.full((n_pad - N,), pad_token, jnp.int32)])
    ids_lane = ids_flat.reshape(n_tiles, 1, tile)  # lane-dense id layout

    if resident:
        kernel = functools.partial(_embed_mask_resident_kernel,
                                   pad_token=int(pad_token),
                                   eot_token=int(eot_token))
        table_spec = pl.BlockSpec((V, D), lambda i, ids: (0, 0))  # VMEM-resident
        scratch = []
    else:
        kernel = functools.partial(_embed_mask_gather_kernel,
                                   pad_token=int(pad_token),
                                   eot_token=int(eot_token))
        table_spec = pl.BlockSpec(memory_space=pl.ANY)            # stays in HBM
        scratch = [pltpu.SemaphoreType.DMA(())]

    emb_flat, mask_i32 = pl.pallas_call(
        kernel,
        out_shape=(jax.ShapeDtypeStruct((n_pad, D), table.dtype),
                   jax.ShapeDtypeStruct((n_tiles, 1, tile), jnp.int32)),
        grid_spec=pltpu.PrefetchScalarGridSpec(
            num_scalar_prefetch=1,                    # ids -> SMEM, drive gather
            grid=(n_tiles,),
            in_specs=[
                pl.BlockSpec((1, 1, tile), lambda i, ids: (i, 0, 0)),
                table_spec,
            ],
            out_specs=[
                pl.BlockSpec((tile, D), lambda i, ids: (i, 0)),   # lane-dense emb
                pl.BlockSpec((1, 1, tile), lambda i, ids: (i, 0, 0)),  # fused mask
            ],
            scratch_shapes=scratch,
        ),
        compiler_params=pltpu.CompilerParams(
            dimension_semantics=("parallel",)),   # independent tiles -> both TCs on v7x
    )(ids_flat, ids_lane, table)

    emb = emb_flat[:N].reshape(B, S, D)
    mask = mask_i32.reshape(-1)[:N].reshape(B, S).astype(jnp.bool_)
    return emb, mask


# ----------------------------- driver ------------------------------------------

if __name__ == "__main__":
    key = jax.random.PRNGKey(0)
    k_tab, k_ids, k_tab2, k_ids2 = jax.random.split(key, 4)

    # --- Path 1: small table -> VMEM-resident fast path -------------------------
    B, S = 2, 8          # batch, sequence length -> 16 tokens
    V, D = 256, 128      # small vocab -> 128 KiB table (resident path)
    table = jax.random.normal(k_tab, (V, D), dtype=jnp.float32)
    token_ids = jax.random.randint(k_ids, (B, S), minval=2, maxval=V,
                                   dtype=jnp.int32)
    token_ids = token_ids.at[0, -1].set(EOT_TOKEN)
    token_ids = token_ids.at[1, -2:].set(PAD_TOKEN)

    emb, mask = embedder_forward(token_ids, table)
    jax.block_until_ready((emb, mask))

    ref_emb = table[token_ids]
    ref_mask = (token_ids != PAD_TOKEN) & (token_ids != EOT_TOKEN)
    assert emb.shape == (B, S, D) and emb.dtype == table.dtype
    assert jnp.allclose(emb, ref_emb), "resident-path embedding mismatch"
    assert bool(jnp.all(mask == ref_mask)), "resident-path mask mismatch"

    # --- Path 2: force the HBM per-row DMA gather path ---------------------------
    B2, S2 = 2, 120      # 240 tokens -> 2 tiles of 128 (exercises tail padding)
    V2, D2 = 512, 128
    table2 = jax.random.normal(k_tab2, (V2, D2), dtype=jnp.float32)
    token_ids2 = jax.random.randint(k_ids2, (B2, S2), minval=2, maxval=V2,
                                    dtype=jnp.int32)
    token_ids2 = token_ids2.at[0, 0].set(EOT_TOKEN)
    token_ids2 = token_ids2.at[1, -3:].set(PAD_TOKEN)

    emb2, mask2 = embedder_forward(token_ids2, table2, tile=128,
                                   vmem_table_bytes=0)  # force HBM gather path
    jax.block_until_ready((emb2, mask2))

    ref_emb2 = table2[token_ids2]
    ref_mask2 = (token_ids2 != PAD_TOKEN) & (token_ids2 != EOT_TOKEN)
    assert emb2.shape == (B2, S2, D2) and emb2.dtype == table2.dtype
    assert jnp.allclose(emb2, ref_emb2), "gather-path embedding mismatch"
    assert bool(jnp.all(mask2 == ref_mask2)), "gather-path mask mismatch"

    print("KERNEL_OK")
</pallas_src>

<mosaic_0001>
module attributes {stable_mosaic.version = 11 : i64} {
  func.func @_embed_mask_resident_kernel(%arg0: i32, %arg1: memref<16xi32, #tpu.memory_space<smem>>, %arg2: memref<1x1x16xi32, #tpu.memory_space<vmem>>, %arg3: memref<256x128xf32, #tpu.memory_space<vmem>>, %arg4: memref<16x128xf32, #tpu.memory_space<vmem>>, %arg5: memref<1x1x16xi32, #tpu.memory_space<vmem>>) attributes {dimension_semantics = [#tpu.dimension_semantics<parallel>], iteration_bounds = array<i64: 1>, scalar_prefetch = 1 : i64, scratch_operands = 0 : i64, tpu.core_type = #tpu.core_type<tc>, window_params = [{transform_indices = @transform_0, window_bounds = array<i64: 1, 1, 16>}, {pipeline_mode = #tpu.pipeline_mode<synchronous>, transform_indices = @transform_1, window_bounds = array<i64: 256, 128>}, {transform_indices = @transform_2, window_bounds = array<i64: 16, 128>}, {transform_indices = @transform_3, window_bounds = array<i64: 1, 1, 16>}]} {
    %c16_i32 = arith.constant 16 : i32
    %0 = arith.muli %arg0, %c16_i32 : i32
    %1 = tpu.assume_multiple %0, 16 : i32
    %c0_i32 = arith.constant 0 : i32
    %2 = arith.addi %1, %c0_i32 : i32
    %3 = arith.index_cast %2 : i32 to index
    %4 = memref.load %arg1[%3] : memref<16xi32, #tpu.memory_space<smem>>
    %c0_i32_0 = arith.constant 0 : i32
    %c255_i32 = arith.constant 255 : i32
    %5 = arith.maxsi %c0_i32_0, %4 : i32
    %6 = arith.minsi %c255_i32, %5 : i32
    %7 = arith.index_cast %6 : i32 to index
    %c0 = arith.constant 0 : index
    %8 = vector.load %arg3[%7, %c0] : memref<256x128xf32, #tpu.memory_space<vmem>>, vector<1x128xf32>
    %c0_1 = arith.constant 0 : index
    %c0_2 = arith.constant 0 : index
    %9 = vector.load %arg4[%c0_1, %c0_2] : memref<16x128xf32, #tpu.memory_space<vmem>>, vector<1x128xf32>
    tpu.vector_store %arg4[%c0_1, %c0_2], %8 {strides = array<i32>} : memref<16x128xf32, #tpu.memory_space<vmem>>, vector<1x128xf32>,
    %c1_i32 = arith.constant 1 : i32
    %10 = arith.addi %1, %c1_i32 : i32
    %11 = arith.index_cast %10 : i32 to index
    %12 = memref.load %arg1[%11] : memref<16xi32, #tpu.memory_space<smem>>
    %c0_i32_3 = arith.constant 0 : i32
    %c255_i32_4 = arith.constant 255 : i32
    %13 = arith.maxsi %c0_i32_3, %12 : i32
    %14 = arith.minsi %c255_i32_4, %13 : i32
    %15 = arith.index_cast %14 : i32 to index
    %c0_5 = arith.constant 0 : index
    %16 = vector.load %arg3[%15, %c0_5] : memref<256x128xf32, #tpu.memory_space<vmem>>, vector<1x128xf32>
    %c1 = arith.constant 1 : index
    %c0_6 = arith.constant 0 : index
    %17 = vector.load %arg4[%c1, %c0_6] : memref<16x128xf32, #tpu.memory_space<vmem>>, vector<1x128xf32>
    tpu.vector_store %arg4[%c1, %c0_6], %16 {strides = array<i32>} : memref<16x128xf32, #tpu.memory_space<vmem>>, vector<1x128xf32>,
    %c2_i32 = arith.constant 2 : i32
    %18 = arith.addi %1, %c2_i32 : i32
    %19 = arith.index_cast %18 : i32 to index
    %20 = memref.load %arg1[%19] : memref<16xi32, #tpu.memory_space<smem>>
    %c0_i32_7 = arith.constant 0 : i32
    %c255_i32_8 = arith.constant 255 : i32
    %21 = arith.maxsi %c0_i32_7, %20 : i32
    %22 = arith.minsi %c255_i32_8, %21 : i32
    %23 = arith.index_cast %22 : i32 to index
    %c0_9 = arith.constant 0 : index
    %24 = vector.load %arg3[%23, %c0_9] : memref<256x128xf32, #tpu.memory_space<vmem>>, vector<1x128xf32>
    %c2 = arith.constant 2 : index
    %c0_10 = arith.constant 0 : index
    %25 = vector.load %arg4[%c2, %c0_10] : memref<16x128xf32, #tpu.memory_space<vmem>>, vector<1x128xf32>
    tpu.vector_store %arg4[%c2, %c0_10], %24 {strides = array<i32>} : memref<16x128xf32, #tpu.memory_space<vmem>>, vector<1x128xf32>,
    %c3_i32 = arith.constant 3 : i32
    %26 = arith.addi %1, %c3_i32 : i32
    %27 = arith.index_cast %26 : i32 to index
    %28 = memref.load %arg1[%27] : memref<16xi32, #tpu.memory_space<smem>>
    %c0_i32_11 = arith.constant 0 : i32
    %c255_i32_12 = arith.constant 255 : i32
    %29 = arith.maxsi %c0_i32_11, %28 : i32
    %30 = arith.minsi %c255_i32_12, %29 : i32
    %31 = arith.index_cast %30 : i32 to index
    %c0_13 = arith.constant 0 : index
    %32 = vector.load %arg3[%31, %c0_13] : memref<256x128xf32, #tpu.memory_space<vmem>>, vector<1x128xf32>
    %c3 = arith.constant 3 : index
    %c0_14 = arith.constant 0 : index
    %33 = vector.load %arg4[%c3, %c0_14] : memref<16x128xf32, #tpu.memory_space<vmem>>, vector<1x128xf32>
    tpu.vector_store %arg4[%c3, %c0_14], %32 {strides = array<i32>} : memref<16x128xf32, #tpu.memory_space<vmem>>, vector<1x128xf32>,
    %c4_i32 = arith.constant 4 : i32
    %34 = arith.addi %1, %c4_i32 : i32
    %35 = arith.index_cast %34 : i32 to index
    %36 = memref.load %arg1[%35] : memref<16xi32, #tpu.memory_space<smem>>
    %c0_i32_15 = arith.constant 0 : i32
    %c255_i32_16 = arith.constant 255 : i32
    %37 = arith.maxsi %c0_i32_15, %36 : i32
    %38 = arith.minsi %c255_i32_16, %37 : i32
    %39 = arith.index_cast %38 : i32 to index
    %c0_17 = arith.constant 0 : index
    %40 = vector.load %arg3[%39, %c0_17] : memref<256x128xf32, #tpu.memory_space<vmem>>, vector<1x128xf32>
    %c4 = arith.constant 4 : index
    %c0_18 = arith.constant 0 : index
    %41 = vector.load %arg4[%c4, %c0_18] : memref<16x128xf32, #tpu.memory_space<vmem>>, vector<1x128xf32>
    tpu.vector_store %arg4[%c4, %c0_18], %40 {strides = array<i32>} : memref<16x128xf32, #tpu.memory_space<vmem>>, vector<1x128xf32>,
    %c5_i32 = arith.constant 5 : i32
    %42 = arith.addi %1, %c5_i32 : i32
    %43 = arith.index_cast %42 : i32 to index
    %44 = memref.load %arg1[%43] : memref<16xi32, #tpu.memory_space<smem>>
    %c0_i32_19 = arith.constant 0 : i32
    %c255_i32_20 = arith.constant 255 : i32
    %45 = arith.maxsi %c0_i32_19, %44 : i32
    %46 = arith.minsi %c255_i32_20, %45 : i32
    %47 = arith.index_cast %46 : i32 to index
    %c0_21 = arith.constant 0 : index
    %48 = vector.load %arg3[%47, %c0_21] : memref<256x128xf32, #tpu.memory_space<vmem>>, vector<1x128xf32>
    %c5 = arith.constant 5 : index
    %c0_22 = arith.constant 0 : index
    %49 = vector.load %arg4[%c5, %c0_22] : memref<16x128xf32, #tpu.memory_space<vmem>>, vector<1x128xf32>
    tpu.vector_store %arg4[%c5, %c0_22], %48 {strides = array<i32>} : memref<16x128xf32, #tpu.memory_space<vmem>>, vector<1x128xf32>,
    %c6_i32 = arith.constant 6 : i32
    %50 = arith.addi %1, %c6_i32 : i32
    %51 = arith.index_cast %50 : i32 to index
    %52 = memref.load %arg1[%51] : memref<16xi32, #tpu.memory_space<smem>>
    %c0_i32_23 = arith.constant 0 : i32
    %c255_i32_24 = arith.constant 255 : i32
    %53 = arith.maxsi %c0_i32_23, %52 : i32
    %54 = arith.minsi %c255_i32_24, %53 : i32
    %55 = arith.index_cast %54 : i32 to index
    %c0_25 = arith.constant 0 : index
    %56 = vector.load %arg3[%55, %c0_25] : memref<256x128xf32, #tpu.memory_space<vmem>>, vector<1x128xf32>
    %c6 = arith.constant 6 : index
    %c0_26 = arith.constant 0 : index
    %57 = vector.load %arg4[%c6, %c0_26] : memref<16x128xf32, #tpu.memory_space<vmem>>, vector<1x128xf32>
    tpu.vector_store %arg4[%c6, %c0_26], %56 {strides = array<i32>} : memref<16x128xf32, #tpu.memory_space<vmem>>, vector<1x128xf32>,
    %c7_i32 = arith.constant 7 : i32
    %58 = arith.addi %1, %c7_i32 : i32
    %59 = arith.index_cast %58 : i32 to index
    %60 = memref.load %arg1[%59] : memref<16xi32, #tpu.memory_space<smem>>
    %c0_i32_27 = arith.constant 0 : i32
    %c255_i32_28 = arith.constant 255 : i32
    %61 = arith.maxsi %c0_i32_27, %60 : i32
    %62 = arith.minsi %c255_i32_28, %61 : i32
    %63 = arith.index_cast %62 : i32 to index
    %c0_29 = arith.constant 0 : index
    %64 = vector.load %arg3[%63, %c0_29] : memref<256x128xf32, #tpu.memory_space<vmem>>, vector<1x128xf32>
    %c7 = arith.constant 7 : index
    %c0_30 = arith.constant 0 : index
    %65 = vector.load %arg4[%c7, %c0_30] : memref<16x128xf32, #tpu.memory_space<vmem>>, vector<1x128xf32>
    tpu.vector_store %arg4[%c7, %c0_30], %64 {strides = array<i32>} : memref<16x128xf32, #tpu.memory_space<vmem>>, vector<1x128xf32>,
    %c8_i32 = arith.constant 8 : i32
    %66 = arith.addi %1, %c8_i32 : i32
    %67 = arith.index_cast %66 : i32 to index
    %68 = memref.load %arg1[%67] : memref<16xi32, #tpu.memory_space<smem>>
    %c0_i32_31 = arith.constant 0 : i32
    %c255_i32_32 = arith.constant 255 : i32
    %69 = arith.maxsi %c0_i32_31, %68 : i32
    %70 = arith.minsi %c255_i32_32, %69 : i32
    %71 = arith.index_cast %70 : i32 to index
    %c0_33 = arith.constant 0 : index
    %72 = vector.load %arg3[%71, %c0_33] : memref<256x128xf32, #tpu.memory_space<vmem>>, vector<1x128xf32>
    %c8 = arith.constant 8 : index
    %c0_34 = arith.constant 0 : index
    %73 = vector.load %arg4[%c8, %c0_34] : memref<16x128xf32, #tpu.memory_space<vmem>>, vector<1x128xf32>
    tpu.vector_store %arg4[%c8, %c0_34], %72 {strides = array<i32>} : memref<16x128xf32, #tpu.memory_space<vmem>>, vector<1x128xf32>,
    %c9_i32 = arith.constant 9 : i32
    %74 = arith.addi %1, %c9_i32 : i32
    %75 = arith.index_cast %74 : i32 to index
    %76 = memref.load %arg1[%75] : memref<16xi32, #tpu.memory_space<smem>>
    %c0_i32_35 = arith.constant 0 : i32
    %c255_i32_36 = arith.constant 255 : i32
    %77 = arith.maxsi %c0_i32_35, %76 : i32
    %78 = arith.minsi %c255_i32_36, %77 : i32
    %79 = arith.index_cast %78 : i32 to index
    %c0_37 = arith.constant 0 : index
    %80 = vector.load %arg3[%79, %c0_37] : memref<256x128xf32, #tpu.memory_space<vmem>>, vector<1x128xf32>
    %c9 = arith.constant 9 : index
    %c0_38 = arith.constant 0 : index
    %81 = vector.load %arg4[%c9, %c0_38] : memref<16x128xf32, #tpu.memory_space<vmem>>, vector<1x128xf32>
    tpu.vector_store %arg4[%c9, %c0_38], %80 {strides = array<i32>} : memref<16x128xf32, #tpu.memory_space<vmem>>, vector<1x128xf32>,
    %c10_i32 = arith.constant 10 : i32
    %82 = arith.addi %1, %c10_i32 : i32
    %83 = arith.index_cast %82 : i32 to index
    %84 = memref.load %arg1[%83] : memref<16xi32, #tpu.memory_space<smem>>
    %c0_i32_39 = arith.constant 0 : i32
    %c255_i32_40 = arith.constant 255 : i32
    %85 = arith.maxsi %c0_i32_39, %84 : i32
    %86 = arith.minsi %c255_i32_40, %85 : i32
    %87 = arith.index_cast %86 : i32 to index
    %c0_41 = arith.constant 0 : index
    %88 = vector.load %arg3[%87, %c0_41] : memref<256x128xf32, #tpu.memory_space<vmem>>, vector<1x128xf32>
    %c10 = arith.constant 10 : index
    %c0_42 = arith.constant 0 : index
    %89 = vector.load %arg4[%c10, %c0_42] : memref<16x128xf32, #tpu.memory_space<vmem>>, vector<1x128xf32>
    tpu.vector_store %arg4[%c10, %c0_42], %88 {strides = array<i32>} : memref<16x128xf32, #tpu.memory_space<vmem>>, vector<1x128xf32>,
    %c11_i32 = arith.constant 11 : i32
    %90 = arith.addi %1, %c11_i32 : i32
    %91 = arith.index_cast %90 : i32 to index
    %92 = memref.load %arg1[%91] : memref<16xi32, #tpu.memory_space<smem>>
    %c0_i32_43 = arith.constant 0 : i32
    %c255_i32_44 = arith.constant 255 : i32
    %93 = arith.maxsi %c0_i32_43, %92 : i32
    %94 = arith.minsi %c255_i32_44, %93 : i32
    %95 = arith.index_cast %94 : i32 to index
    %c0_45 = arith.constant 0 : index
    %96 = vector.load %arg3[%95, %c0_45] : memref<256x128xf32, #tpu.memory_space<vmem>>, vector<1x128xf32>
    %c11 = arith.constant 11 : index
    %c0_46 = arith.constant 0 : index
    %97 = vector.load %arg4[%c11, %c0_46] : memref<16x128xf32, #tpu.memory_space<vmem>>, vector<1x128xf32>
    tpu.vector_store %arg4[%c11, %c0_46], %96 {strides = array<i32>} : memref<16x128xf32, #tpu.memory_space<vmem>>, vector<1x128xf32>,
    %c12_i32 = arith.constant 12 : i32
    %98 = arith.addi %1, %c12_i32 : i32
    %99 = arith.index_cast %98 : i32 to index
    %100 = memref.load %arg1[%99] : memref<16xi32, #tpu.memory_space<smem>>
    %c0_i32_47 = arith.constant 0 : i32
    %c255_i32_48 = arith.constant 255 : i32
    %101 = arith.maxsi %c0_i32_47, %100 : i32
    %102 = arith.minsi %c255_i32_48, %101 : i32
    %103 = arith.index_cast %102 : i32 to index
    %c0_49 = arith.constant 0 : index
    %104 = vector.load %arg3[%103, %c0_49] : memref<256x128xf32, #tpu.memory_space<vmem>>, vector<1x128xf32>
    %c12 = arith.constant 12 : index
    %c0_50 = arith.constant 0 : index
    %105 = vector.load %arg4[%c12, %c0_50] : memref<16x128xf32, #tpu.memory_space<vmem>>, vector<1x128xf32>
    tpu.vector_store %arg4[%c12, %c0_50], %104 {strides = array<i32>} : memref<16x128xf32, #tpu.memory_space<vmem>>, vector<1x128xf32>,
    %c13_i32 = arith.constant 13 : i32
    %106 = arith.addi %1, %c13_i32 : i32
    %107 = arith.index_cast %106 : i32 to index
    %108 = memref.load %arg1[%107] : memref<16xi32, #tpu.memory_space<smem>>
    %c0_i32_51 = arith.constant 0 : i32
    %c255_i32_52 = arith.constant 255 : i32
    %109 = arith.maxsi %c0_i32_51, %108 : i32
    %110 = arith.minsi %c255_i32_52, %109 : i32
    %111 = arith.index_cast %110 : i32 to index
    %c0_53 = arith.constant 0 : index
    %112 = vector.load %arg3[%111, %c0_53] : memref<256x128xf32, #tpu.memory_space<vmem>>, vector<1x128xf32>
    %c13 = arith.constant 13 : index
    %c0_54 = arith.constant 0 : index
    %113 = vector.load %arg4[%c13, %c0_54] : memref<16x128xf32, #tpu.memory_space<vmem>>, vector<1x128xf32>
    tpu.vector_store %arg4[%c13, %c0_54], %112 {strides = array<i32>} : memref<16x128xf32, #tpu.memory_space<vmem>>, vector<1x128xf32>,
    %c14_i32 = arith.constant 14 : i32
    %114 = arith.addi %1, %c14_i32 : i32
    %115 = arith.index_cast %114 : i32 to index
    %116 = memref.load %arg1[%115] : memref<16xi32, #tpu.memory_space<smem>>
    %c0_i32_55 = arith.constant 0 : i32
    %c255_i32_56 = arith.constant 255 : i32
    %117 = arith.maxsi %c0_i32_55, %116 : i32
    %118 = arith.minsi %c255_i32_56, %117 : i32
    %119 = arith.index_cast %118 : i32 to index
    %c0_57 = arith.constant 0 : index
    %120 = vector.load %arg3[%119, %c0_57] : memref<256x128xf32, #tpu.memory_space<vmem>>, vector<1x128xf32>
    %c14 = arith.constant 14 : index
    %c0_58 = arith.constant 0 : index
    %121 = vector.load %arg4[%c14, %c0_58] : memref<16x128xf32, #tpu.memory_space<vmem>>, vector<1x128xf32>
    tpu.vector_store %arg4[%c14, %c0_58], %120 {strides = array<i32>} : memref<16x128xf32, #tpu.memory_space<vmem>>, vector<1x128xf32>,
    %c15_i32 = arith.constant 15 : i32
    %122 = arith.addi %1, %c15_i32 : i32
    %123 = arith.index_cast %122 : i32 to index
    %124 = memref.load %arg1[%123] : memref<16xi32, #tpu.memory_space<smem>>
    %c0_i32_59 = arith.constant 0 : i32
    %c255_i32_60 = arith.constant 255 : i32
    %125 = arith.maxsi %c0_i32_59, %124 : i32
    %126 = arith.minsi %c255_i32_60, %125 : i32
    %127 = arith.index_cast %126 : i32 to index
    %c0_61 = arith.constant 0 : index
    %128 = vector.load %arg3[%127, %c0_61] : memref<256x128xf32, #tpu.memory_space<vmem>>, vector<1x128xf32>
    %c15 = arith.constant 15 : index
    %c0_62 = arith.constant 0 : index
    %129 = vector.load %arg4[%c15, %c0_62] : memref<16x128xf32, #tpu.memory_space<vmem>>, vector<1x128xf32>
    tpu.vector_store %arg4[%c15, %c0_62], %128 {strides = array<i32>} : memref<16x128xf32, #tpu.memory_space<vmem>>, vector<1x128xf32>,
    %c0_63 = arith.constant 0 : index
    %c0_64 = arith.constant 0 : index
    %c0_65 = arith.constant 0 : index
    %130 = vector.load %arg2[%c0_63, %c0_64, %c0_65] : memref<1x1x16xi32, #tpu.memory_space<vmem>>, vector<1x1x16xi32>
    %c0_i32_66 = arith.constant 0 : i32
    %131 = vector.broadcast %c0_i32_66 : i32 to vector<1x1x16xi32>
    %132 = arith.cmpi ne, %130, %131 : vector<1x1x16xi32>
    %c1_i32_67 = arith.constant 1 : i32
    %133 = vector.broadcast %c1_i32_67 : i32 to vector<1x1x16xi32>
    %134 = arith.cmpi ne, %130, %133 : vector<1x1x16xi32>
    %135 = arith.andi %132, %134 : vector<1x1x16xi1>
    %136 = arith.extui %135 : vector<1x1x16xi1> to vector<1x1x16xi32>
    %c0_68 = arith.constant 0 : index
    %c0_69 = arith.constant 0 : index
    %c0_70 = arith.constant 0 : index
    %137 = vector.load %arg5[%c0_68, %c0_69, %c0_70] : memref<1x1x16xi32, #tpu.memory_space<vmem>>, vector<1x1x16xi32>
    tpu.vector_store %arg5[%c0_68, %c0_69, %c0_70], %136 {strides = array<i32>} : memref<1x1x16xi32, #tpu.memory_space<vmem>>, vector<1x1x16xi32>,
    return
  }
  func.func @transform_0(%arg0: i32, %arg1: memref<16xi32, #tpu.memory_space<smem>>) -> (i32, i32, i32) {
    %c0_i32 = arith.constant 0 : i32
    %c0_i32_0 = arith.constant 0 : i32
    %c0_i32_1 = arith.constant 0 : i32
    return %arg0, %c0_i32, %c0_i32_0 : i32, i32, i32
  }
  func.func @transform_1(%arg0: i32, %arg1: memref<16xi32, #tpu.memory_space<smem>>) -> (i32, i32) {
    %c0_i32 = arith.constant 0 : i32
    %c0_i32_0 = arith.constant 0 : i32
    %c0_i32_1 = arith.constant 0 : i32
    return %c0_i32, %c0_i32_0 : i32, i32
  }
  func.func @transform_2(%arg0: i32, %arg1: memref<16xi32, #tpu.memory_space<smem>>) -> (i32, i32) {
    %c0_i32 = arith.constant 0 : i32
    %c0_i32_0 = arith.constant 0 : i32
    return %arg0, %c0_i32 : i32, i32
  }
  func.func @transform_3(%arg0: i32, %arg1: memref<16xi32, #tpu.memory_space<smem>>) -> (i32, i32, i32) {
    %c0_i32 = arith.constant 0 : i32
    %c0_i32_0 = arith.constant 0 : i32
    %c0_i32_1 = arith.constant 0 : i32
    return %arg0, %c0_i32, %c0_i32_0 : i32, i32, i32
  }
}

</mosaic_0001>

<llo_original>
// kernel: tpu_custom_call.1
$region0: #{tpu_custom_call.1}
  #allocation0 [shape = 'u32[]', space=smem, size = 0x4, offset = 0x4, fixed_abs, tag = 'smem constant byte address 0x4 - core index']
  #allocation1 [shape = 'u32[144,128]{1,0:T(1,128)}', space=vmem, size = 0x12000, scoped, tag = 'internal scratch']
  #allocation2 [shape = 's32[1]{0}', space=sflag, size = 0x4, scoped, tag = 'scoped memory for tpu_custom_call.1']
  #allocation3 [shape = 'u8[512]{0}', space=smem, size = 0x200, scoped, tag = 'prefetched SMEM operand 0']
  %s0 = inlined_call_operand.hbm [shape: s32[16], index: 0, kind: input, shape index: {}]
  %s1 = inlined_call_operand.vmem [shape: s32[1,1,16], index: 1, kind: input, shape index: {}]
  %s2 = inlined_call_operand.hbm [shape: f32[256,128], index: 2, kind: input, shape index: {}]
  %s3 = inlined_call_operand.hbm [shape: f32[16,128], index: 3, kind: output, shape index: {0}]
  %s4 = inlined_call_operand.hbm [shape: s32[1,1,16], index: 4, kind: output, shape index: {1}]
  %5 = xla_tuple %s3, %s4
  %s6 = sld [smem:[#allocation0]]
  $region30: #{tpu_custom_call.1} parent=0
    _
  %s8 = ssub.s32 1, %s6
  %s9 = scalar_select 0, %s8, %s6
  %11 = dma.hbm_to_smem %s0, 16, [#allocation3], [#allocation2]
  %12 = dma.done [#allocation2], 16
  %13 = sfence
  $region1: #{tpu_custom_call.1} parent=0
    #allocation4 [shape = 'u8[131072]{0}', space=vmem, size = 0x20000, scoped, tag = 'input window, operand 2, single buffered']
    #allocation5 [shape = 's32[1]{0}', space=sflag, size = 0x4, scoped, tag = 'scoped memory for tpu_custom_call.1']
    #allocation6 [shape = 's32[1]{0}', space=sflag, size = 0x4, scoped, tag = 'scoped memory for tpu_custom_call.1']
    #allocation7 [shape = 'u8[8192]{0}', space=vmem, size = 0x2000, scoped, tag = 'output window, operand 0, single buffered']
    #allocation8 [shape = 'u8[512]{0}', space=vmem, size = 0x400, scoped, tag = 'output window, operand 1, single buffered']
    #allocation9 [shape = 's32[1]{0}', space=sflag, size = 0x4, scoped, tag = 'scoped memory for tpu_custom_call.1']
    %14 = vsyncpa [#allocation5], 0
    %15 = vsyncpa [#allocation6], 0
    %16 = vsyncpa [#allocation9], 0
    // Predicated region
    $region2: #{tpu_custom_call.1} parent=1 // pred_check
      _
    $region3: #{tpu_custom_call.1} parent=1 // pred_check_branch
      %18 = sbr.rel (0) target = $region5
    $region4: #{tpu_custom_call.1} parent=1 // pred_region
      _
    $region5: #{tpu_custom_call.1} parent=1 // pred_fallthru
      _
    // Predicated region
    $region6: #{tpu_custom_call.1} parent=1 // pred_check
      _
    $region7: #{tpu_custom_call.1} parent=1 // pred_check_branch
      %20 = sbr.rel (0) target = $region9
    $region8: #{tpu_custom_call.1} parent=1 // pred_region
      %s22 = ssub.s32 4096, 4096
      %23 = vsyncadd [#allocation5], %s22
      %s24 = sshll.u32 [#allocation4], 4
      %s25 = int_to_ptr.vmem [resolvable:$true] %s24
      %30 = dma.hbm_to_vmem [thread:$0]  %s2, 4096, %s25, [#allocation5], 128, 128, 8
    $region9: #{tpu_custom_call.1} parent=1 // pred_fallthru
      _
    // Predicated region
    $region10: #{tpu_custom_call.1} parent=1 // pred_check
      _
    $region11: #{tpu_custom_call.1} parent=1 // pred_check_branch
      %32 = sbr.rel (0) target = $region13
    $region12: #{tpu_custom_call.1} parent=1 // pred_region
      %33 = dma.done [#allocation5], 4096
    $region13: #{tpu_custom_call.1} parent=1 // pred_fallthru
      _
    %s34 = smul.u32 0, 16
    %s35 = sld [smem:[#allocation3 + %s34]]
    %p36 = scmp.gt.s32.totalorder %s35, 0
    %s37 = scalar_select %p36, %s35, 0
    %p38 = scmp.lt.s32.totalorder %s37, 255
    %s39 = scalar_select %p38, %s37, 255
    %s40 = scalar_lea.vmem [#allocation4], %s39
    %v41 = vld [vmem:[%s40] sm:$0x1]
    %42 = vst [vmem:[#allocation7] sm:$0x1] %v41
    %s43 = sadd.s32 %s34, 1
    %s44 = sld [smem:[#allocation3 + %s43]]
    %p45 = scmp.gt.s32.totalorder %s44, 0
    %s46 = scalar_select %p45, %s44, 0
    %p47 = scmp.lt.s32.totalorder %s46, 255
    %s48 = scalar_select %p47, %s46, 255
    %s49 = scalar_lea.vmem [#allocation4], %s48
    %v50 = vld [vmem:[%s49] sm:$0x1]
    %51 = vst [vmem:[#allocation7 + $0x1] sm:$0x1] %v50
    %s52 = sadd.s32 %s34, 2
    %s53 = sld [smem:[#allocation3 + %s52]]
    %p54 = scmp.gt.s32.totalorder %s53, 0
    %s55 = scalar_select %p54, %s53, 0
    %p56 = scmp.lt.s32.totalorder %s55, 255
    %s57 = scalar_select %p56, %s55, 255
    %s58 = scalar_lea.vmem [#allocation4], %s57
    %v59 = vld [vmem:[%s58] sm:$0x1]
    %60 = vst [vmem:[#allocation7 + $0x2] sm:$0x1] %v59
    %s61 = sadd.s32 %s34, 3
    %s62 = sld [smem:[#allocation3 + %s61]]
    %p63 = scmp.gt.s32.totalorder %s62, 0
    %s64 = scalar_select %p63, %s62, 0
    %p65 = scmp.lt.s32.totalorder %s64, 255
    %s66 = scalar_select %p65, %s64, 255
    %s67 = scalar_lea.vmem [#allocation4], %s66
    %v68 = vld [vmem:[%s67] sm:$0x1]
    %69 = vst [vmem:[#allocation7 + $0x3] sm:$0x1] %v68
    %s70 = sadd.s32 %s34, 4
    %s71 = sld [smem:[#allocation3 + %s70]]
    %p72 = scmp.gt.s32.totalorder %s71, 0
    %s73 = scalar_select %p72, %s71, 0
    %p74 = scmp.lt.s32.totalorder %s73, 255
    %s75 = scalar_select %p74, %s73, 255
    %s76 = scalar_lea.vmem [#allocation4], %s75
    %v77 = vld [vmem:[%s76] sm:$0x1]
    %78 = vst [vmem:[#allocation7 + $0x4] sm:$0x1] %v77
    %s79 = sadd.s32 %s34, 5
    %s80 = sld [smem:[#allocation3 + %s79]]
    %p81 = scmp.gt.s32.totalorder %s80, 0
    %s82 = scalar_select %p81, %s80, 0
    %p83 = scmp.lt.s32.totalorder %s82, 255
    %s84 = scalar_select %p83, %s82, 255
    %s85 = scalar_lea.vmem [#allocation4], %s84
    %v86 = vld [vmem:[%s85] sm:$0x1]
    %87 = vst [vmem:[#allocation7 + $0x5] sm:$0x1] %v86
    %s88 = sadd.s32 %s34, 6
    %s89 = sld [smem:[#allocation3 + %s88]]
    %p90 = scmp.gt.s32.totalorder %s89, 0
    %s91 = scalar_select %p90, %s89, 0
    %p92 = scmp.lt.s32.totalorder %s91, 255
    %s93 = scalar_select %p92, %s91, 255
    %s94 = scalar_lea.vmem [#allocation4], %s93
    %v95 = vld [vmem:[%s94] sm:$0x1]
    %96 = vst [vmem:[#allocation7 + $0x6] sm:$0x1] %v95
    %s97 = sadd.s32 %s34, 7
    %s98 = sld [smem:[#allocation3 + %s97]]
    %p99 = scmp.gt.s32.totalorder %s98, 0
    %s100 = scalar_select %p99, %s98, 0
    %p101 = scmp.lt.s32.totalorder %s100, 255
    %s102 = scalar_select %p101, %s100, 255
    %s103 = scalar_lea.vmem [#allocation4], %s102
    %v104 = vld [vmem:[%s103] sm:$0x1]
    %105 = vst [vmem:[#allocation7 + $0x7] sm:$0x1] %v104
    %s106 = sadd.s32 %s34, 8
    %s107 = sld [smem:[#allocation3 + %s106]]
    %p108 = scmp.gt.s32.totalorder %s107, 0
    %s109 = scalar_select %p108, %s107, 0
    %p110 = scmp.lt.s32.totalorder %s109, 255
    %s111 = scalar_select %p110, %s109, 255
    %s112 = scalar_lea.vmem [#allocation4], %s111
    %v113 = vld [vmem:[%s112] sm:$0x1]
    %114 = vst [vmem:[#allocation7 + $0x8] sm:$0x1] %v113
    %s115 = sadd.s32 %s34, 9
    %s116 = sld [smem:[#allocation3 + %s115]]
    %p117 = scmp.gt.s32.totalorder %s116, 0
    %s118 = scalar_select %p117, %s116, 0
    %p119 = scmp.lt.s32.totalorder %s118, 255
    %s120 = scalar_select %p119, %s118, 255
    %s121 = scalar_lea.vmem [#allocation4], %s120
    %v122 = vld [vmem:[%s121] sm:$0x1]
    %123 = vst [vmem:[#allocation7 + $0x9] sm:$0x1] %v122
    %s124 = sadd.s32 %s34, 10
    %s125 = sld [smem:[#allocation3 + %s124]]
    %p126 = scmp.gt.s32.totalorder %s125, 0
    %s127 = scalar_select %p126, %s125, 0
    %p128 = scmp.lt.s32.totalorder %s127, 255
    %s129 = scalar_select %p128, %s127, 255
    %s130 = scalar_lea.vmem [#allocation4], %s129
    %v131 = vld [vmem:[%s130] sm:$0x1]
    %132 = vst [vmem:[#allocation7 + $0xa] sm:$0x1] %v131
    %s133 = sadd.s32 %s34, 11
    %s134 = sld [smem:[#allocation3 + %s133]]
    %p135 = scmp.gt.s32.totalorder %s134, 0
    %s136 = scalar_select %p135, %s134, 0
    %p137 = scmp.lt.s32.totalorder %s136, 255
    %s138 = scalar_select %p137, %s136, 255
    %s139 = scalar_lea.vmem [#allocation4], %s138
    %v140 = vld [vmem:[%s139] sm:$0x1]
    %141 = vst [vmem:[#allocation7 + $0xb] sm:$0x1] %v140
    %s142 = sadd.s32 %s34, 12
    %s143 = sld [smem:[#allocation3 + %s142]]
    %p144 = scmp.gt.s32.totalorder %s143, 0
    %s145 = scalar_select %p144, %s143, 0
    %p146 = scmp.lt.s32.totalorder %s145, 255
    %s147 = scalar_select %p146, %s145, 255
    %s148 = scalar_lea.vmem [#allocation4], %s147
    %v149 = vld [vmem:[%s148] sm:$0x1]
    %150 = vst [vmem:[#allocation7 + $0xc] sm:$0x1] %v149
    %s151 = sadd.s32 %s34, 13
    %s152 = sld [smem:[#allocation3 + %s151]]
    %p153 = scmp.gt.s32.totalorder %s152, 0
    %s154 = scalar_select %p153, %s152, 0
    %p155 = scmp.lt.s32.totalorder %s154, 255
    %s156 = scalar_select %p155, %s154, 255
    %s157 = scalar_lea.vmem [#allocation4], %s156
    %v158 = vld [vmem:[%s157] sm:$0x1]
    %159 = vst [vmem:[#allocation7 + $0xd] sm:$0x1] %v158
    %s160 = sadd.s32 %s34, 14
    %s161 = sld [smem:[#allocation3 + %s160]]
    %p162 = scmp.gt.s32.totalorder %s161, 0
    %s163 = scalar_select %p162, %s161, 0
    %p164 = scmp.lt.s32.totalorder %s163, 255
    %s165 = scalar_select %p164, %s163, 255
    %s166 = scalar_lea.vmem [#allocation4], %s165
    %v167 = vld [vmem:[%s166] sm:$0x1]
    %168 = vst [vmem:[#allocation7 + $0xe] sm:$0x1] %v167
    %s169 = sadd.s32 %s34, 15
    %s170 = sld [smem:[#allocation3 + %s169]]
    %p171 = scmp.gt.s32.totalorder %s170, 0
    %s172 = scalar_select %p171, %s170, 0
    %p173 = scmp.lt.s32.totalorder %s172, 255
    %s174 = scalar_select %p173, %s172, 255
    %s175 = scalar_lea.vmem [#allocation4], %s174
    %v176 = vld [vmem:[%s175] sm:$0x1]
    %177 = vst [vmem:[#allocation7 + $0xf] sm:$0x1] %v176
    %v178 = vld [vmem:[%s1] sm:$0x1]
    %vm179 = vcmp.ne.s32.totalorder %v178, 0
    %vm180 = vcmp.ne.s32.totalorder %v178, 1
    %vm181 = vmand %vm179, %vm180
    %v182 = vsel %vm181, 1, 0
    %vm183 = vcmask 122880
    %184 = vst.msk [vmem:[#allocation8] sm:$0x1] %vm183, %v182
    // Predicated region
    $region14: #{tpu_custom_call.1} parent=1 // pred_check
      _
    $region15: #{tpu_custom_call.1} parent=1 // pred_check_branch
      %186 = sbr.rel (0) target = $region17
    $region16: #{tpu_custom_call.1} parent=1 // pred_region
      %s188 = ssub.s32 256, 256
      %189 = vsyncadd [#allocation6], %s188
      %s190 = sshll.u32 [#allocation7], 4
      %s191 = int_to_ptr.vmem [resolvable:$true] %s190
      %196 = dma.vmem_to_hbm [thread:$0]  %s191, 256, %s3, [#allocation6], 128, 128, 8
    $region17: #{tpu_custom_call.1} parent=1 // pred_fallthru
      _
    // Predicated region
    $region18: #{tpu_custom_call.1} parent=1 // pred_check
      _
    $region19: #{tpu_custom_call.1} parent=1 // pred_check_branch
      %198 = sbr.rel (0) target = $region21
    $region20: #{tpu_custom_call.1} parent=1 // pred_region
      %s200 = ssub.s32 16, 16
      %201 = vsyncadd [#allocation9], %s200
      %s203 = sshll.u32 [#allocation8], 4
      %s204 = int_to_ptr.vmem [resolvable:$true] %s203
      %206 = dma.vmem_to_hbm [thread:$0]  %s204, 16, %s4, [#allocation9]
    $region21: #{tpu_custom_call.1} parent=1 // pred_fallthru
      _
    // Predicated region
    $region22: #{tpu_custom_call.1} parent=1 // pred_check
      _
    $region23: #{tpu_custom_call.1} parent=1 // pred_check_branch
      %208 = sbr.rel (0) target = $region25
    $region24: #{tpu_custom_call.1} parent=1 // pred_region
      %209 = dma.done [#allocation6], 256
    $region25: #{tpu_custom_call.1} parent=1 // pred_fallthru
      _
    // Predicated region
    $region26: #{tpu_custom_call.1} parent=1 // pred_check
      _
    $region27: #{tpu_custom_call.1} parent=1 // pred_check_branch
      %211 = sbr.rel (0) target = $region29
    $region28: #{tpu_custom_call.1} parent=1 // pred_region
      %212 = dma.done [#allocation9], 16
    $region29: #{tpu_custom_call.1} parent=1 // pred_fallthru
      _
    %213 = vsyncpa [#allocation5], 1
    %214 = vsyncpa [#allocation6], 1
    %215 = vsyncpa [#allocation9], 1

</llo_original>
